<compile_context>
chip_gen: v6e
topology: v6e:2x2x1
jax: 0.10.0
libtpu: 0.0.40
codegen_flags: <defaults>
</compile_context>

<pallas_src>
import numpy as np
import jax
import jax.numpy as jnp
from jax.experimental import pallas as pl
from jax.experimental.pallas import tpu as pltpu


def _ada_kernel(x_ref, u_ref, c_ref, w1t_ref, b1_ref, gamma_ref, beta_ref,
                mask_ref, w2t_ref, b2_ref, out_ref):
    # x_ref:    (B, T, V, S, D)  activations in their ORIGINAL layout
    # u_ref:    (T, V, 1, D)     rank-1 fold of policy-mixed shared-bottom
    #                            weight and specific-head weight
    # c_ref:    (T, 1, 1)        folded constant (shared-bottom + head biases)
    # w1t_ref:  (T, S, H)        tower Linear(S->H) weight, transposed
    # b1_ref:   (T, 1, H)        tower Linear(S->H) bias
    # gamma/beta: (T, 1, H)      BatchNorm1d affine
    # mask_ref: (T, B, H)        scaled dropout keep-mask
    # w2t_ref:  (T, H, O)        tower Linear(H->O) weight, transposed
    # b2_ref:   (T, 1, O)
    # out_ref:  (T, B, O)
    T = out_ref.shape[0]

    x = x_ref[...]
    u = u_ref[...]
    c = c_ref[...]
    w1t = w1t_ref[...]
    b1 = b1_ref[...]
    gamma = gamma_ref[...]
    beta = beta_ref[...]
    mask = mask_ref[...]
    w2t = w2t_ref[...]
    b2 = b2_ref[...]

    eps = 1e-5
    # T is tiny (3): static unroll.  Each task uses only plain 2-D MXU matmuls
    # plus VPU/XLU reductions — nothing fancier than the forward needs.
    for t in range(T):
        xt = x[:, t]                                    # (B, V, S, D), leading-dim slice

        # Stage 1: policy-mixed shared bottom Linear(D->1) and specific head
        # Linear(V->1) folded into the rank-1 weight u[t]; VPU multiply, then
        # reduce over the (untiled) V axis and the lane (D) axis.  This
        # replaces the old K=512 contraction against a materialized W_eff.
        zt = jnp.sum(jnp.sum(xt * u[t], axis=1), axis=-1) + c[t]     # (B, S)

        # Stage 2: tower Linear(S->H) on the MXU (default precision, f32 acc).
        ht = jnp.dot(zt, w1t[t], preferred_element_type=jnp.float32) + b1[t]

        # BatchNorm1d, training-mode batch statistics (biased var), eps=1e-5.
        # NOTE: if B is ever tiled with a grid, these stats must still span
        # the full batch (two-pass / cross-tile accumulator).
        mean = jnp.mean(ht, axis=0, keepdims=True)
        var = jnp.mean(jnp.square(ht - mean), axis=0, keepdims=True)
        ht = (ht - mean) * jax.lax.rsqrt(var + eps) * gamma[t] + beta[t]

        # ReLU + Dropout (precomputed scaled keep-mask).
        ht = jnp.maximum(ht, 0.0) * mask[t]

        # Tower Linear(H->O) on the MXU.
        ot = jnp.dot(ht, w2t[t], preferred_element_type=jnp.float32) + b2[t]

        out_ref[t] = ot.astype(out_ref.dtype)


@jax.jit
def ada_multi_mlp_forward(x, sbW, sbB, policy, spW, spB,
                          W1, b1, gamma, beta, drop_mask, W2, b2):
    """x: (B, T, V, S, D).  Returns a single (T, B, O) array (split per task
    outside jit)."""
    B, T, V, S, D = x.shape
    H = W1.shape[1]
    O = W2.shape[1]

    # --- exact, tiny parameter folds (no activation-sized tensors) -----------
    # policy-weighted shared bottoms: w_eff[t] = sum_i policy[t, i] * sbW[i]
    w_eff = policy @ sbW.reshape(T, D)                   # (T, D)
    b_eff = (policy @ sbB)[:, 0]                         # (T,)
    spw = spW.reshape(T, V)                              # (T, V)
    # rank-1 fold of Linear(D->1) and Linear(V->1); also folds the PyTorch
    # x.transpose(2, 3) by indexing as (v, d) against x's native (V, S, D).
    u = (spw[:, :, None] * w_eff[:, None, :]).reshape(T, V, 1, D)
    # constant term from the two biases; added to z *before* the tower matmul
    # so the kernel's MXU inputs match the reference bit-for-bit (up to f32
    # summation order) and BatchNorm cannot amplify a precision mismatch.
    c = (b_eff * jnp.sum(spw, axis=-1) + spB[:, 0]).reshape(T, 1, 1)
    W1T = jnp.transpose(W1, (0, 2, 1))                   # (T, S, H)
    W2T = jnp.transpose(W2, (0, 2, 1))                   # (T, H, O)
    b1r = b1.reshape(T, 1, H)
    gammar = gamma.reshape(T, 1, H)
    betar = beta.reshape(T, 1, H)
    b2r = b2.reshape(T, 1, O)

    # Single invocation, everything VMEM-resident, one DMA per operand.
    # (For production B: grid over B marked "parallel" + resident-weight
    # BlockSpecs + lane-dense output layout, per the header comment.)
    vmem = pl.BlockSpec(memory_space=pltpu.MemorySpace.VMEM)
    out = pl.pallas_call(
        _ada_kernel,
        out_shape=jax.ShapeDtypeStruct((T, B, O), jnp.float32),
        in_specs=[vmem] * 10,
        out_specs=vmem,
    )(x, u, c, W1T, b1r, gammar, betar, drop_mask, W2T, b2r)

    return out


def reference_forward(x, sbW, sbB, policy, spW, spB,
                      W1, b1, gamma, beta, drop_mask, W2, b2):
    """Pure-JAX mirror of the PyTorch forward (same sampled policy / mask)."""
    B, T, V, S, D = x.shape
    xt = jnp.swapaxes(x, 2, 3)                           # (B, T, S, V, D)
    y = None
    for i in range(T):
        yi = jnp.einsum('btsvd,d->btsv', xt, sbW[i, 0]) + sbB[i, 0]
        term = yi * policy[:, i][None, :, None, None]
        y = term if y is None else y + term
    outs = []
    for t in range(T):
        z = jnp.einsum('bsv,v->bs', y[:, t], spW[t, 0]) + spB[t, 0]
        h = z @ W1[t].T + b1[t]
        mean = jnp.mean(h, axis=0, keepdims=True)
        var = jnp.mean((h - mean) ** 2, axis=0, keepdims=True)
        hn = (h - mean) / jnp.sqrt(var + 1e-5) * gamma[t] + beta[t]
        hr = jnp.maximum(hn, 0.0)
        hd = hr * drop_mask[t]
        outs.append(hd @ W2[t].T + b2[t])
    return outs


if __name__ == "__main__":
    # small shapes consistent with the module
    B, T, V, S, D, H, O = 2, 3, 4, 8, 16, 32, 8
    temperature = 1.0
    p_drop = 0.2

    key = jax.random.PRNGKey(0)
    ks = jax.random.split(key, 12)

    def uni(k, shape, fan_in):
        b = 1.0 / np.sqrt(fan_in)
        return jax.random.uniform(k, shape, minval=-b, maxval=b, dtype=jnp.float32)

    # deterministic parameter init (torch nn.Linear-style bounds)
    sbW = uni(ks[0], (T, 1, D), D)        # shared_bottoms weights
    sbB = uni(ks[1], (T, 1), D)           # shared_bottoms biases
    spW = uni(ks[2], (T, 1, V), V)        # specific_tasks_2 weights
    spB = uni(ks[3], (T, 1), V)           # specific_tasks_2 biases
    W1 = uni(ks[4], (T, H, S), S)         # tower Linear(S->H)
    b1 = uni(ks[5], (T, H), S)
    gamma = jnp.ones((T, H), jnp.float32)  # BatchNorm1d affine init
    beta = jnp.zeros((T, H), jnp.float32)
    W2 = uni(ks[6], (T, O, H), H)         # tower Linear(H->O)
    b2 = uni(ks[7], (T, O), H)
    task_logits = 0.001 * jax.random.normal(ks[8], (T, T), dtype=jnp.float32)

    # input (bsz, num_tasks, num_views, seq_len, sensor_dim)
    x = jax.random.normal(ks[9], (B, T, V, S, D), dtype=jnp.float32)

    # hard Gumbel-softmax sample (forward value is the one-hot)
    g = jax.random.gumbel(ks[10], (T, T), dtype=jnp.float32)
    y_soft = jax.nn.softmax((task_logits + g) / temperature, axis=-1)
    policy = jax.nn.one_hot(jnp.argmax(y_soft, axis=-1), T, dtype=jnp.float32)

    # dropout keep-mask (training semantics, scaled by 1/(1-p)), one per task
    keep = jax.random.bernoulli(ks[11], 1.0 - p_drop, (T, B, H))
    drop_mask = keep.astype(jnp.float32) / (1.0 - p_drop)

    out = ada_multi_mlp_forward(x, sbW, sbB, policy, spW, spB,
                                W1, b1, gamma, beta, drop_mask, W2, b2)
    out = jax.block_until_ready(out)

    # per-task list is built OUTSIDE jit (review item: no per-task slicing /
    # multi-output overhead inside the jitted function)
    outs = [out[t] for t in range(T)]

    refs = reference_forward(x, sbW, sbB, policy, spW, spB,
                             W1, b1, gamma, beta, drop_mask, W2, b2)
    for a, r in zip(outs, refs):
        assert a.shape == (B, O)
        np.testing.assert_allclose(np.asarray(a), np.asarray(r),
                                   rtol=1e-2, atol=1e-2)

    print("KERNEL_OK")
</pallas_src>

<mosaic_0001>
module attributes {stable_mosaic.version = 11 : i64} {
  func.func @_ada_kernel(%arg0: memref<2x3x4x8x16xf32, #tpu.memory_space<vmem>>, %arg1: memref<3x4x1x16xf32, #tpu.memory_space<vmem>>, %arg2: memref<3x1x1xf32, #tpu.memory_space<vmem>>, %arg3: memref<3x8x32xf32, #tpu.memory_space<vmem>>, %arg4: memref<3x1x32xf32, #tpu.memory_space<vmem>>, %arg5: memref<3x1x32xf32, #tpu.memory_space<vmem>>, %arg6: memref<3x1x32xf32, #tpu.memory_space<vmem>>, %arg7: memref<3x2x32xf32, #tpu.memory_space<vmem>>, %arg8: memref<3x32x8xf32, #tpu.memory_space<vmem>>, %arg9: memref<3x1x8xf32, #tpu.memory_space<vmem>>, %arg10: memref<3x2x8xf32, #tpu.memory_space<vmem>>) attributes {dimension_semantics = [], scalar_prefetch = 0 : i64, scratch_operands = 0 : i64, tpu.core_type = #tpu.core_type<tc>} {
    %c0 = arith.constant 0 : index
    %c0_0 = arith.constant 0 : index
    %c0_1 = arith.constant 0 : index
    %c0_2 = arith.constant 0 : index
    %c0_3 = arith.constant 0 : index
    %0 = vector.load %arg0[%c0, %c0_0, %c0_1, %c0_2, %c0_3] : memref<2x3x4x8x16xf32, #tpu.memory_space<vmem>>, vector<2x3x4x8x16xf32>
    %c0_4 = arith.constant 0 : index
    %c0_5 = arith.constant 0 : index
    %c0_6 = arith.constant 0 : index
    %c0_7 = arith.constant 0 : index
    %1 = vector.load %arg1[%c0_4, %c0_5, %c0_6, %c0_7] : memref<3x4x1x16xf32, #tpu.memory_space<vmem>>, vector<3x4x1x16xf32>
    %c0_8 = arith.constant 0 : index
    %c0_9 = arith.constant 0 : index
    %c0_10 = arith.constant 0 : index
    %2 = vector.load %arg2[%c0_8, %c0_9, %c0_10] : memref<3x1x1xf32, #tpu.memory_space<vmem>>, vector<3x1x1xf32>
    %c0_11 = arith.constant 0 : index
    %c0_12 = arith.constant 0 : index
    %c0_13 = arith.constant 0 : index
    %3 = vector.load %arg3[%c0_11, %c0_12, %c0_13] : memref<3x8x32xf32, #tpu.memory_space<vmem>>, vector<3x8x32xf32>
    %c0_14 = arith.constant 0 : index
    %c0_15 = arith.constant 0 : index
    %c0_16 = arith.constant 0 : index
    %4 = vector.load %arg4[%c0_14, %c0_15, %c0_16] : memref<3x1x32xf32, #tpu.memory_space<vmem>>, vector<3x1x32xf32>
    %c0_17 = arith.constant 0 : index
    %c0_18 = arith.constant 0 : index
    %c0_19 = arith.constant 0 : index
    %5 = vector.load %arg5[%c0_17, %c0_18, %c0_19] : memref<3x1x32xf32, #tpu.memory_space<vmem>>, vector<3x1x32xf32>
    %c0_20 = arith.constant 0 : index
    %c0_21 = arith.constant 0 : index
    %c0_22 = arith.constant 0 : index
    %6 = vector.load %arg6[%c0_20, %c0_21, %c0_22] : memref<3x1x32xf32, #tpu.memory_space<vmem>>, vector<3x1x32xf32>
    %c0_23 = arith.constant 0 : index
    %c0_24 = arith.constant 0 : index
    %c0_25 = arith.constant 0 : index
    %7 = vector.load %arg7[%c0_23, %c0_24, %c0_25] : memref<3x2x32xf32, #tpu.memory_space<vmem>>, vector<3x2x32xf32>
    %c0_26 = arith.constant 0 : index
    %c0_27 = arith.constant 0 : index
    %c0_28 = arith.constant 0 : index
    %8 = vector.load %arg8[%c0_26, %c0_27, %c0_28] : memref<3x32x8xf32, #tpu.memory_space<vmem>>, vector<3x32x8xf32>
    %c0_29 = arith.constant 0 : index
    %c0_30 = arith.constant 0 : index
    %c0_31 = arith.constant 0 : index
    %9 = vector.load %arg9[%c0_29, %c0_30, %c0_31] : memref<3x1x8xf32, #tpu.memory_space<vmem>>, vector<3x1x8xf32>
    %10 = vector.extract_strided_slice %0 {offsets = [0, 0, 0, 0, 0], sizes = [2, 1, 4, 8, 16], strides = [1, 1, 1, 1, 1]} : vector<2x3x4x8x16xf32> to vector<2x1x4x8x16xf32>
    %11 = vector.shape_cast %10 : vector<2x1x4x8x16xf32> to vector<2x4x8x16xf32>
    %12 = vector.extract_strided_slice %1 {offsets = [0, 0, 0, 0], sizes = [1, 4, 1, 16], strides = [1, 1, 1, 1]} : vector<3x4x1x16xf32> to vector<1x4x1x16xf32>
    %13 = vector.shape_cast %12 : vector<1x4x1x16xf32> to vector<4x1x16xf32>
    %14 = vector.shape_cast %13 : vector<4x1x16xf32> to vector<1x4x1x16xf32>
    %15 = vector.broadcast %14 : vector<1x4x1x16xf32> to vector<2x4x8x16xf32>
    %16 = arith.mulf %11, %15 : vector<2x4x8x16xf32>
    %cst = arith.constant dense<0.000000e+00> : vector<2x8x16xf32>
    %17 = vector.multi_reduction <add>, %16, %cst [1] : vector<2x4x8x16xf32> to vector<2x8x16xf32>
    %cst_32 = arith.constant dense<0.000000e+00> : vector<2x8xf32>
    %18 = vector.multi_reduction <add>, %17, %cst_32 [2] : vector<2x8x16xf32> to vector<2x8xf32>
    %19 = vector.extract_strided_slice %2 {offsets = [0, 0, 0], sizes = [1, 1, 1], strides = [1, 1, 1]} : vector<3x1x1xf32> to vector<1x1x1xf32>
    %20 = vector.shape_cast %19 : vector<1x1x1xf32> to vector<1x1xf32>
    %21 = vector.broadcast %20 : vector<1x1xf32> to vector<2x8xf32>
    %22 = arith.addf %18, %21 : vector<2x8xf32>
    %23 = vector.extract_strided_slice %3 {offsets = [0, 0, 0], sizes = [1, 8, 32], strides = [1, 1, 1]} : vector<3x8x32xf32> to vector<1x8x32xf32>
    %24 = vector.shape_cast %23 : vector<1x8x32xf32> to vector<8x32xf32>
    %cst_33 = arith.constant dense<0.000000e+00> : vector<2x32xf32>
    %25 = tpu.matmul %22, %24, %cst_33 {dimension_numbers = #tpu.dot_dimension_numbers<[1], [0], [0], [1], [0, 0, 1, 1], [], []>} : vector<2x8xf32>, vector<8x32xf32>, vector<2x32xf32> -> vector<2x32xf32>
    %26 = vector.extract_strided_slice %4 {offsets = [0, 0, 0], sizes = [1, 1, 32], strides = [1, 1, 1]} : vector<3x1x32xf32> to vector<1x1x32xf32>
    %27 = vector.shape_cast %26 : vector<1x1x32xf32> to vector<1x32xf32>
    %28 = vector.broadcast %27 : vector<1x32xf32> to vector<2x32xf32>
    %29 = arith.addf %25, %28 : vector<2x32xf32>
    %cst_34 = arith.constant dense<0.000000e+00> : vector<32xf32>
    %30 = vector.multi_reduction <add>, %29, %cst_34 [0] : vector<2x32xf32> to vector<32xf32>
    %31 = vector.shape_cast %30 : vector<32xf32> to vector<1x32xf32>
    %cst_35 = arith.constant 2.000000e+00 : f32
    %32 = vector.broadcast %cst_35 : f32 to vector<1x32xf32>
    %33 = arith.divf %31, %32 : vector<1x32xf32>
    %34 = vector.broadcast %33 : vector<1x32xf32> to vector<2x32xf32>
    %35 = arith.subf %29, %34 : vector<2x32xf32>
    %36 = arith.mulf %35, %35 : vector<2x32xf32>
    %cst_36 = arith.constant dense<0.000000e+00> : vector<32xf32>
    %37 = vector.multi_reduction <add>, %36, %cst_36 [0] : vector<2x32xf32> to vector<32xf32>
    %38 = vector.shape_cast %37 : vector<32xf32> to vector<1x32xf32>
    %cst_37 = arith.constant 2.000000e+00 : f32
    %39 = vector.broadcast %cst_37 : f32 to vector<1x32xf32>
    %40 = arith.divf %38, %39 : vector<1x32xf32>
    %41 = vector.broadcast %33 : vector<1x32xf32> to vector<2x32xf32>
    %42 = arith.subf %29, %41 : vector<2x32xf32>
    %cst_38 = arith.constant 9.99999974E-6 : f32
    %43 = vector.broadcast %cst_38 : f32 to vector<1x32xf32>
    %44 = arith.addf %40, %43 : vector<1x32xf32>
    %45 = math.rsqrt %44 : vector<1x32xf32>
    %46 = vector.broadcast %45 : vector<1x32xf32> to vector<2x32xf32>
    %47 = arith.mulf %42, %46 : vector<2x32xf32>
    %48 = vector.extract_strided_slice %5 {offsets = [0, 0, 0], sizes = [1, 1, 32], strides = [1, 1, 1]} : vector<3x1x32xf32> to vector<1x1x32xf32>
    %49 = vector.shape_cast %48 : vector<1x1x32xf32> to vector<1x32xf32>
    %50 = vector.broadcast %49 : vector<1x32xf32> to vector<2x32xf32>
    %51 = arith.mulf %47, %50 : vector<2x32xf32>
    %52 = vector.extract_strided_slice %6 {offsets = [0, 0, 0], sizes = [1, 1, 32], strides = [1, 1, 1]} : vector<3x1x32xf32> to vector<1x1x32xf32>
    %53 = vector.shape_cast %52 : vector<1x1x32xf32> to vector<1x32xf32>
    %54 = vector.broadcast %53 : vector<1x32xf32> to vector<2x32xf32>
    %55 = arith.addf %51, %54 : vector<2x32xf32>
    %cst_39 = arith.constant 0.000000e+00 : f32
    %56 = vector.broadcast %cst_39 : f32 to vector<2x32xf32>
    %57 = arith.maximumf %55, %56 : vector<2x32xf32>
    %58 = vector.extract_strided_slice %7 {offsets = [0, 0, 0], sizes = [1, 2, 32], strides = [1, 1, 1]} : vector<3x2x32xf32> to vector<1x2x32xf32>
    %59 = vector.shape_cast %58 : vector<1x2x32xf32> to vector<2x32xf32>
    %60 = arith.mulf %57, %59 : vector<2x32xf32>
    %61 = vector.extract_strided_slice %8 {offsets = [0, 0, 0], sizes = [1, 32, 8], strides = [1, 1, 1]} : vector<3x32x8xf32> to vector<1x32x8xf32>
    %62 = vector.shape_cast %61 : vector<1x32x8xf32> to vector<32x8xf32>
    %cst_40 = arith.constant dense<0.000000e+00> : vector<2x8xf32>
    %63 = tpu.matmul %60, %62, %cst_40 {dimension_numbers = #tpu.dot_dimension_numbers<[1], [0], [0], [1], [0, 0, 1, 1], [], []>} : vector<2x32xf32>, vector<32x8xf32>, vector<2x8xf32> -> vector<2x8xf32>
    %64 = vector.extract_strided_slice %9 {offsets = [0, 0, 0], sizes = [1, 1, 8], strides = [1, 1, 1]} : vector<3x1x8xf32> to vector<1x1x8xf32>
    %65 = vector.shape_cast %64 : vector<1x1x8xf32> to vector<1x8xf32>
    %66 = vector.broadcast %65 : vector<1x8xf32> to vector<2x8xf32>
    %67 = arith.addf %63, %66 : vector<2x8xf32>
    %c0_41 = arith.constant 0 : index
    %c0_42 = arith.constant 0 : index
    %c0_43 = arith.constant 0 : index
    %68 = vector.load %arg10[%c0_41, %c0_42, %c0_43] : memref<3x2x8xf32, #tpu.memory_space<vmem>>, vector<1x2x8xf32>
    %69 = vector.shape_cast %68 : vector<1x2x8xf32> to vector<2x8xf32>
    %70 = vector.shape_cast %67 : vector<2x8xf32> to vector<1x2x8xf32>
    tpu.vector_store %arg10[%c0_41, %c0_42, %c0_43], %70 {strides = array<i32>} : memref<3x2x8xf32, #tpu.memory_space<vmem>>, vector<1x2x8xf32>,
    %71 = vector.extract_strided_slice %0 {offsets = [0, 1, 0, 0, 0], sizes = [2, 1, 4, 8, 16], strides = [1, 1, 1, 1, 1]} : vector<2x3x4x8x16xf32> to vector<2x1x4x8x16xf32>
    %72 = vector.shape_cast %71 : vector<2x1x4x8x16xf32> to vector<2x4x8x16xf32>
    %73 = vector.extract_strided_slice %1 {offsets = [1, 0, 0, 0], sizes = [1, 4, 1, 16], strides = [1, 1, 1, 1]} : vector<3x4x1x16xf32> to vector<1x4x1x16xf32>
    %74 = vector.shape_cast %73 : vector<1x4x1x16xf32> to vector<4x1x16xf32>
    %75 = vector.shape_cast %74 : vector<4x1x16xf32> to vector<1x4x1x16xf32>
    %76 = vector.broadcast %75 : vector<1x4x1x16xf32> to vector<2x4x8x16xf32>
    %77 = arith.mulf %72, %76 : vector<2x4x8x16xf32>
    %cst_44 = arith.constant dense<0.000000e+00> : vector<2x8x16xf32>
    %78 = vector.multi_reduction <add>, %77, %cst_44 [1] : vector<2x4x8x16xf32> to vector<2x8x16xf32>
    %cst_45 = arith.constant dense<0.000000e+00> : vector<2x8xf32>
    %79 = vector.multi_reduction <add>, %78, %cst_45 [2] : vector<2x8x16xf32> to vector<2x8xf32>
    %80 = vector.extract_strided_slice %2 {offsets = [1, 0, 0], sizes = [1, 1, 1], strides = [1, 1, 1]} : vector<3x1x1xf32> to vector<1x1x1xf32>
    %81 = vector.shape_cast %80 : vector<1x1x1xf32> to vector<1x1xf32>
    %82 = vector.broadcast %81 : vector<1x1xf32> to vector<2x8xf32>
    %83 = arith.addf %79, %82 : vector<2x8xf32>
    %84 = vector.extract_strided_slice %3 {offsets = [1, 0, 0], sizes = [1, 8, 32], strides = [1, 1, 1]} : vector<3x8x32xf32> to vector<1x8x32xf32>
    %85 = vector.shape_cast %84 : vector<1x8x32xf32> to vector<8x32xf32>
    %cst_46 = arith.constant dense<0.000000e+00> : vector<2x32xf32>
    %86 = tpu.matmul %83, %85, %cst_46 {dimension_numbers = #tpu.dot_dimension_numbers<[1], [0], [0], [1], [0, 0, 1, 1], [], []>} : vector<2x8xf32>, vector<8x32xf32>, vector<2x32xf32> -> vector<2x32xf32>
    %87 = vector.extract_strided_slice %4 {offsets = [1, 0, 0], sizes = [1, 1, 32], strides = [1, 1, 1]} : vector<3x1x32xf32> to vector<1x1x32xf32>
    %88 = vector.shape_cast %87 : vector<1x1x32xf32> to vector<1x32xf32>
    %89 = vector.broadcast %88 : vector<1x32xf32> to vector<2x32xf32>
    %90 = arith.addf %86, %89 : vector<2x32xf32>
    %cst_47 = arith.constant dense<0.000000e+00> : vector<32xf32>
    %91 = vector.multi_reduction <add>, %90, %cst_47 [0] : vector<2x32xf32> to vector<32xf32>
    %92 = vector.shape_cast %91 : vector<32xf32> to vector<1x32xf32>
    %cst_48 = arith.constant 2.000000e+00 : f32
    %93 = vector.broadcast %cst_48 : f32 to vector<1x32xf32>
    %94 = arith.divf %92, %93 : vector<1x32xf32>
    %95 = vector.broadcast %94 : vector<1x32xf32> to vector<2x32xf32>
    %96 = arith.subf %90, %95 : vector<2x32xf32>
    %97 = arith.mulf %96, %96 : vector<2x32xf32>
    %cst_49 = arith.constant dense<0.000000e+00> : vector<32xf32>
    %98 = vector.multi_reduction <add>, %97, %cst_49 [0] : vector<2x32xf32> to vector<32xf32>
    %99 = vector.shape_cast %98 : vector<32xf32> to vector<1x32xf32>
    %cst_50 = arith.constant 2.000000e+00 : f32
    %100 = vector.broadcast %cst_50 : f32 to vector<1x32xf32>
    %101 = arith.divf %99, %100 : vector<1x32xf32>
    %102 = vector.broadcast %94 : vector<1x32xf32> to vector<2x32xf32>
    %103 = arith.subf %90, %102 : vector<2x32xf32>
    %cst_51 = arith.constant 9.99999974E-6 : f32
    %104 = vector.broadcast %cst_51 : f32 to vector<1x32xf32>
    %105 = arith.addf %101, %104 : vector<1x32xf32>
    %106 = math.rsqrt %105 : vector<1x32xf32>
    %107 = vector.broadcast %106 : vector<1x32xf32> to vector<2x32xf32>
    %108 = arith.mulf %103, %107 : vector<2x32xf32>
    %109 = vector.extract_strided_slice %5 {offsets = [1, 0, 0], sizes = [1, 1, 32], strides = [1, 1, 1]} : vector<3x1x32xf32> to vector<1x1x32xf32>
    %110 = vector.shape_cast %109 : vector<1x1x32xf32> to vector<1x32xf32>
    %111 = vector.broadcast %110 : vector<1x32xf32> to vector<2x32xf32>
    %112 = arith.mulf %108, %111 : vector<2x32xf32>
    %113 = vector.extract_strided_slice %6 {offsets = [1, 0, 0], sizes = [1, 1, 32], strides = [1, 1, 1]} : vector<3x1x32xf32> to vector<1x1x32xf32>
    %114 = vector.shape_cast %113 : vector<1x1x32xf32> to vector<1x32xf32>
    %115 = vector.broadcast %114 : vector<1x32xf32> to vector<2x32xf32>
    %116 = arith.addf %112, %115 : vector<2x32xf32>
    %cst_52 = arith.constant 0.000000e+00 : f32
    %117 = vector.broadcast %cst_52 : f32 to vector<2x32xf32>
    %118 = arith.maximumf %116, %117 : vector<2x32xf32>
    %119 = vector.extract_strided_slice %7 {offsets = [1, 0, 0], sizes = [1, 2, 32], strides = [1, 1, 1]} : vector<3x2x32xf32> to vector<1x2x32xf32>
    %120 = vector.shape_cast %119 : vector<1x2x32xf32> to vector<2x32xf32>
    %121 = arith.mulf %118, %120 : vector<2x32xf32>
    %122 = vector.extract_strided_slice %8 {offsets = [1, 0, 0], sizes = [1, 32, 8], strides = [1, 1, 1]} : vector<3x32x8xf32> to vector<1x32x8xf32>
    %123 = vector.shape_cast %122 : vector<1x32x8xf32> to vector<32x8xf32>
    %cst_53 = arith.constant dense<0.000000e+00> : vector<2x8xf32>
    %124 = tpu.matmul %121, %123, %cst_53 {dimension_numbers = #tpu.dot_dimension_numbers<[1], [0], [0], [1], [0, 0, 1, 1], [], []>} : vector<2x32xf32>, vector<32x8xf32>, vector<2x8xf32> -> vector<2x8xf32>
    %125 = vector.extract_strided_slice %9 {offsets = [1, 0, 0], sizes = [1, 1, 8], strides = [1, 1, 1]} : vector<3x1x8xf32> to vector<1x1x8xf32>
    %126 = vector.shape_cast %125 : vector<1x1x8xf32> to vector<1x8xf32>
    %127 = vector.broadcast %126 : vector<1x8xf32> to vector<2x8xf32>
    %128 = arith.addf %124, %127 : vector<2x8xf32>
    %c1 = arith.constant 1 : index
    %c0_54 = arith.constant 0 : index
    %c0_55 = arith.constant 0 : index
    %129 = vector.load %arg10[%c1, %c0_54, %c0_55] : memref<3x2x8xf32, #tpu.memory_space<vmem>>, vector<1x2x8xf32>
    %130 = vector.shape_cast %129 : vector<1x2x8xf32> to vector<2x8xf32>
    %131 = vector.shape_cast %128 : vector<2x8xf32> to vector<1x2x8xf32>
    tpu.vector_store %arg10[%c1, %c0_54, %c0_55], %131 {strides = array<i32>} : memref<3x2x8xf32, #tpu.memory_space<vmem>>, vector<1x2x8xf32>,
    %132 = vector.extract_strided_slice %0 {offsets = [0, 2, 0, 0, 0], sizes = [2, 1, 4, 8, 16], strides = [1, 1, 1, 1, 1]} : vector<2x3x4x8x16xf32> to vector<2x1x4x8x16xf32>
    %133 = vector.shape_cast %132 : vector<2x1x4x8x16xf32> to vector<2x4x8x16xf32>
    %134 = vector.extract_strided_slice %1 {offsets = [2, 0, 0, 0], sizes = [1, 4, 1, 16], strides = [1, 1, 1, 1]} : vector<3x4x1x16xf32> to vector<1x4x1x16xf32>
    %135 = vector.shape_cast %134 : vector<1x4x1x16xf32> to vector<4x1x16xf32>
    %136 = vector.shape_cast %135 : vector<4x1x16xf32> to vector<1x4x1x16xf32>
    %137 = vector.broadcast %136 : vector<1x4x1x16xf32> to vector<2x4x8x16xf32>
    %138 = arith.mulf %133, %137 : vector<2x4x8x16xf32>
    %cst_56 = arith.constant dense<0.000000e+00> : vector<2x8x16xf32>
    %139 = vector.multi_reduction <add>, %138, %cst_56 [1] : vector<2x4x8x16xf32> to vector<2x8x16xf32>
    %cst_57 = arith.constant dense<0.000000e+00> : vector<2x8xf32>
    %140 = vector.multi_reduction <add>, %139, %cst_57 [2] : vector<2x8x16xf32> to vector<2x8xf32>
    %141 = vector.extract_strided_slice %2 {offsets = [2, 0, 0], sizes = [1, 1, 1], strides = [1, 1, 1]} : vector<3x1x1xf32> to vector<1x1x1xf32>
    %142 = vector.shape_cast %141 : vector<1x1x1xf32> to vector<1x1xf32>
    %143 = vector.broadcast %142 : vector<1x1xf32> to vector<2x8xf32>
    %144 = arith.addf %140, %143 : vector<2x8xf32>
    %145 = vector.extract_strided_slice %3 {offsets = [2, 0, 0], sizes = [1, 8, 32], strides = [1, 1, 1]} : vector<3x8x32xf32> to vector<1x8x32xf32>
    %146 = vector.shape_cast %145 : vector<1x8x32xf32> to vector<8x32xf32>
    %cst_58 = arith.constant dense<0.000000e+00> : vector<2x32xf32>
    %147 = tpu.matmul %144, %146, %cst_58 {dimension_numbers = #tpu.dot_dimension_numbers<[1], [0], [0], [1], [0, 0, 1, 1], [], []>} : vector<2x8xf32>, vector<8x32xf32>, vector<2x32xf32> -> vector<2x32xf32>
    %148 = vector.extract_strided_slice %4 {offsets = [2, 0, 0], sizes = [1, 1, 32], strides = [1, 1, 1]} : vector<3x1x32xf32> to vector<1x1x32xf32>
    %149 = vector.shape_cast %148 : vector<1x1x32xf32> to vector<1x32xf32>
    %150 = vector.broadcast %149 : vector<1x32xf32> to vector<2x32xf32>
    %151 = arith.addf %147, %150 : vector<2x32xf32>
    %cst_59 = arith.constant dense<0.000000e+00> : vector<32xf32>
    %152 = vector.multi_reduction <add>, %151, %cst_59 [0] : vector<2x32xf32> to vector<32xf32>
    %153 = vector.shape_cast %152 : vector<32xf32> to vector<1x32xf32>
    %cst_60 = arith.constant 2.000000e+00 : f32
    %154 = vector.broadcast %cst_60 : f32 to vector<1x32xf32>
    %155 = arith.divf %153, %154 : vector<1x32xf32>
    %156 = vector.broadcast %155 : vector<1x32xf32> to vector<2x32xf32>
    %157 = arith.subf %151, %156 : vector<2x32xf32>
    %158 = arith.mulf %157, %157 : vector<2x32xf32>
    %cst_61 = arith.constant dense<0.000000e+00> : vector<32xf32>
    %159 = vector.multi_reduction <add>, %158, %cst_61 [0] : vector<2x32xf32> to vector<32xf32>
    %160 = vector.shape_cast %159 : vector<32xf32> to vector<1x32xf32>
    %cst_62 = arith.constant 2.000000e+00 : f32
    %161 = vector.broadcast %cst_62 : f32 to vector<1x32xf32>
    %162 = arith.divf %160, %161 : vector<1x32xf32>
    %163 = vector.broadcast %155 : vector<1x32xf32> to vector<2x32xf32>
    %164 = arith.subf %151, %163 : vector<2x32xf32>
    %cst_63 = arith.constant 9.99999974E-6 : f32
    %165 = vector.broadcast %cst_63 : f32 to vector<1x32xf32>
    %166 = arith.addf %162, %165 : vector<1x32xf32>
    %167 = math.rsqrt %166 : vector<1x32xf32>
    %168 = vector.broadcast %167 : vector<1x32xf32> to vector<2x32xf32>
    %169 = arith.mulf %164, %168 : vector<2x32xf32>
    %170 = vector.extract_strided_slice %5 {offsets = [2, 0, 0], sizes = [1, 1, 32], strides = [1, 1, 1]} : vector<3x1x32xf32> to vector<1x1x32xf32>
    %171 = vector.shape_cast %170 : vector<1x1x32xf32> to vector<1x32xf32>
    %172 = vector.broadcast %171 : vector<1x32xf32> to vector<2x32xf32>
    %173 = arith.mulf %169, %172 : vector<2x32xf32>
    %174 = vector.extract_strided_slice %6 {offsets = [2, 0, 0], sizes = [1, 1, 32], strides = [1, 1, 1]} : vector<3x1x32xf32> to vector<1x1x32xf32>
    %175 = vector.shape_cast %174 : vector<1x1x32xf32> to vector<1x32xf32>
    %176 = vector.broadcast %175 : vector<1x32xf32> to vector<2x32xf32>
    %177 = arith.addf %173, %176 : vector<2x32xf32>
    %cst_64 = arith.constant 0.000000e+00 : f32
    %178 = vector.broadcast %cst_64 : f32 to vector<2x32xf32>
    %179 = arith.maximumf %177, %178 : vector<2x32xf32>
    %180 = vector.extract_strided_slice %7 {offsets = [2, 0, 0], sizes = [1, 2, 32], strides = [1, 1, 1]} : vector<3x2x32xf32> to vector<1x2x32xf32>
    %181 = vector.shape_cast %180 : vector<1x2x32xf32> to vector<2x32xf32>
    %182 = arith.mulf %179, %181 : vector<2x32xf32>
    %183 = vector.extract_strided_slice %8 {offsets = [2, 0, 0], sizes = [1, 32, 8], strides = [1, 1, 1]} : vector<3x32x8xf32> to vector<1x32x8xf32>
    %184 = vector.shape_cast %183 : vector<1x32x8xf32> to vector<32x8xf32>
    %cst_65 = arith.constant dense<0.000000e+00> : vector<2x8xf32>
    %185 = tpu.matmul %182, %184, %cst_65 {dimension_numbers = #tpu.dot_dimension_numbers<[1], [0], [0], [1], [0, 0, 1, 1], [], []>} : vector<2x32xf32>, vector<32x8xf32>, vector<2x8xf32> -> vector<2x8xf32>
    %186 = vector.extract_strided_slice %9 {offsets = [2, 0, 0], sizes = [1, 1, 8], strides = [1, 1, 1]} : vector<3x1x8xf32> to vector<1x1x8xf32>
    %187 = vector.shape_cast %186 : vector<1x1x8xf32> to vector<1x8xf32>
    %188 = vector.broadcast %187 : vector<1x8xf32> to vector<2x8xf32>
    %189 = arith.addf %185, %188 : vector<2x8xf32>
    %c2 = arith.constant 2 : index
    %c0_66 = arith.constant 0 : index
    %c0_67 = arith.constant 0 : index
    %190 = vector.load %arg10[%c2, %c0_66, %c0_67] : memref<3x2x8xf32, #tpu.memory_space<vmem>>, vector<1x2x8xf32>
    %191 = vector.shape_cast %190 : vector<1x2x8xf32> to vector<2x8xf32>
    %192 = vector.shape_cast %189 : vector<2x8xf32> to vector<1x2x8xf32>
    tpu.vector_store %arg10[%c2, %c0_66, %c0_67], %192 {strides = array<i32>} : memref<3x2x8xf32, #tpu.memory_space<vmem>>, vector<1x2x8xf32>,
    return
  }
}

</mosaic_0001>

<llo_original>
// kernel: ada_multi_mlp_forward.1
$region0: #{ada_multi_mlp_forward.1}
  #allocation0 [shape = 'u32[]', space=smem, size = 0x4, offset = 0x4, fixed_abs, tag = 'smem constant byte address 0x4 - core index']
  #allocation1 [shape = 'u32[144,128]{1,0:T(1,128)}', space=vmem, size = 0x12000, scoped, tag = 'internal scratch']
  %s0 = inlined_call_operand.vmem [shape: f32[2,3,4,8,16], index: 0, kind: input, shape index: {}]
  %s1 = inlined_call_operand.vmem [shape: f32[3,4,1,16], index: 1, kind: input, shape index: {}]
  %s2 = inlined_call_operand.vmem [shape: f32[3,1,1], index: 2, kind: input, shape index: {}]
  %s3 = inlined_call_operand.hbm [shape: f32[3,8,32], index: 3, kind: input, shape index: {}]
  %s4 = inlined_call_operand.vmem [shape: f32[3,1,32], index: 4, kind: input, shape index: {}]
  %s5 = inlined_call_operand.vmem [shape: f32[3,1,32], index: 5, kind: input, shape index: {}]
  %s6 = inlined_call_operand.vmem [shape: f32[3,1,32], index: 6, kind: input, shape index: {}]
  %s7 = inlined_call_operand.vmem [shape: f32[3,2,32], index: 7, kind: input, shape index: {}]
  %s8 = inlined_call_operand.vmem [shape: f32[3,32,8], index: 8, kind: input, shape index: {}]
  %s9 = inlined_call_operand.vmem [shape: f32[3,1,8], index: 9, kind: input, shape index: {}]
  %s10 = inlined_call_operand.hbm [shape: f32[3,2,8], index: 10, kind: output, shape index: {}]
  %s11 = sld [smem:[#allocation0]]
  $region54: #{ada_multi_mlp_forward.1} parent=0
    _
  %s13 = ssub.s32 1, %s11
  %s14 = scalar_select 0, %s13, %s11
  $region1: #{ada_multi_mlp_forward.1} parent=0
    #allocation2 [shape = 'u8[12288]{0}', space=vmem, size = 0x3000, scoped, tag = 'input window, operand 3, single buffered']
    #allocation3 [shape = 's32[1]{0}', space=sflag, size = 0x4, scoped, tag = 'scoped memory for ada_multi_mlp_forward.1']
    #allocation4 [shape = 's32[1]{0}', space=sflag, size = 0x4, scoped, tag = 'scoped memory for ada_multi_mlp_forward.1']
    #allocation5 [shape = 'u8[3072]{0}', space=vmem, size = 0xc00, scoped, tag = 'output window, operand 0, single buffered']
    %15 = vsyncpa [#allocation3], 0
    %16 = vsyncpa [#allocation4], 0
    // Predicated region
    $region2: #{ada_multi_mlp_forward.1} parent=1 // pred_check
      _
    $region3: #{ada_multi_mlp_forward.1} parent=1 // pred_check_branch
      %18 = sbr.rel (0) target = $region5
    $region4: #{ada_multi_mlp_forward.1} parent=1 // pred_region
      _
    $region5: #{ada_multi_mlp_forward.1} parent=1 // pred_fallthru
      _
    // Predicated region
    $region6: #{ada_multi_mlp_forward.1} parent=1 // pred_check
      _
    $region7: #{ada_multi_mlp_forward.1} parent=1 // pred_check_branch
      %20 = sbr.rel (0) target = $region9
    $region8: #{ada_multi_mlp_forward.1} parent=1 // pred_region
      _
    $region9: #{ada_multi_mlp_forward.1} parent=1 // pred_fallthru
      _
    // Predicated region
    $region10: #{ada_multi_mlp_forward.1} parent=1 // pred_check
      _
    $region11: #{ada_multi_mlp_forward.1} parent=1 // pred_check_branch
      %22 = sbr.rel (0) target = $region13
    $region12: #{ada_multi_mlp_forward.1} parent=1 // pred_region
      _
    $region13: #{ada_multi_mlp_forward.1} parent=1 // pred_fallthru
      _
    // Predicated region
    $region14: #{ada_multi_mlp_forward.1} parent=1 // pred_check
      _
    $region15: #{ada_multi_mlp_forward.1} parent=1 // pred_check_branch
      %24 = sbr.rel (0) target = $region17
    $region16: #{ada_multi_mlp_forward.1} parent=1 // pred_region
      %s26 = ssub.s32 384, 384
      %27 = vsyncadd [#allocation3], %s26
      %s28 = sshll.u32 [#allocation2], 4
      %s29 = int_to_ptr.vmem [resolvable:$true] %s28
      %34 = dma.hbm_to_vmem [thread:$0]  %s3, 384, %s29, [#allocation3], 128, 128, 8
    $region17: #{ada_multi_mlp_forward.1} parent=1 // pred_fallthru
      _
    // Predicated region
    $region18: #{ada_multi_mlp_forward.1} parent=1 // pred_check
      _
    $region19: #{ada_multi_mlp_forward.1} parent=1 // pred_check_branch
      %36 = sbr.rel (0) target = $region21
    $region20: #{ada_multi_mlp_forward.1} parent=1 // pred_region
      _
    $region21: #{ada_multi_mlp_forward.1} parent=1 // pred_fallthru
      _
    // Predicated region
    $region22: #{ada_multi_mlp_forward.1} parent=1 // pred_check
      _
    $region23: #{ada_multi_mlp_forward.1} parent=1 // pred_check_branch
      %38 = sbr.rel (0) target = $region25
    $region24: #{ada_multi_mlp_forward.1} parent=1 // pred_region
      _
    $region25: #{ada_multi_mlp_forward.1} parent=1 // pred_fallthru
      _
    // Predicated region
    $region26: #{ada_multi_mlp_forward.1} parent=1 // pred_check
      _
    $region27: #{ada_multi_mlp_forward.1} parent=1 // pred_check_branch
      %40 = sbr.rel (0) target = $region29
    $region28: #{ada_multi_mlp_forward.1} parent=1 // pred_region
      _
    $region29: #{ada_multi_mlp_forward.1} parent=1 // pred_fallthru
      _
    // Predicated region
    $region30: #{ada_multi_mlp_forward.1} parent=1 // pred_check
      _
    $region31: #{ada_multi_mlp_forward.1} parent=1 // pred_check_branch
      %42 = sbr.rel (0) target = $region33
    $region32: #{ada_multi_mlp_forward.1} parent=1 // pred_region
      _
    $region33: #{ada_multi_mlp_forward.1} parent=1 // pred_fallthru
      _
    // Predicated region
    $region34: #{ada_multi_mlp_forward.1} parent=1 // pred_check
      _
    $region35: #{ada_multi_mlp_forward.1} parent=1 // pred_check_branch
      %44 = sbr.rel (0) target = $region37
    $region36: #{ada_multi_mlp_forward.1} parent=1 // pred_region
      _
    $region37: #{ada_multi_mlp_forward.1} parent=1 // pred_fallthru
      _
    // Predicated region
    $region38: #{ada_multi_mlp_forward.1} parent=1 // pred_check
      _
    $region39: #{ada_multi_mlp_forward.1} parent=1 // pred_check_branch
      %46 = sbr.rel (0) target = $region41
    $region40: #{ada_multi_mlp_forward.1} parent=1 // pred_region
      _
    $region41: #{ada_multi_mlp_forward.1} parent=1 // pred_fallthru
      _
    // Predicated region
    $region42: #{ada_multi_mlp_forward.1} parent=1 // pred_check
      _
    $region43: #{ada_multi_mlp_forward.1} parent=1 // pred_check_branch
      %48 = sbr.rel (0) target = $region45
    $region44: #{ada_multi_mlp_forward.1} parent=1 // pred_region
      %49 = dma.done [#allocation3], 384
    $region45: #{ada_multi_mlp_forward.1} parent=1 // pred_fallthru
      _
    %v50 = vld [vmem:[%s0] sm:$0xff]
    %v51 = vld [vmem:[%s0 + $0x8] sm:$0xff]
    %v52 = vld [vmem:[%s0 + $0x10] sm:$0xff]
    %v53 = vld [vmem:[%s0 + $0x18] sm:$0xff]
    %v54 = vld [vmem:[%s0 + $0x20] sm:$0xff]
    %v55 = vld [vmem:[%s0 + $0x28] sm:$0xff]
    %v56 = vld [vmem:[%s0 + $0x30] sm:$0xff]
    %v57 = vld [vmem:[%s0 + $0x38] sm:$0xff]
    %v58 = vld [vmem:[%s0 + $0x40] sm:$0xff]
    %v59 = vld [vmem:[%s0 + $0x48] sm:$0xff]
    %v60 = vld [vmem:[%s0 + $0x50] sm:$0xff]
    %v61 = vld [vmem:[%s0 + $0x58] sm:$0xff]
    %v62 = vld [vmem:[%s0 + $0x60] sm:$0xff]
    %v63 = vld [vmem:[%s0 + $0x68] sm:$0xff]
    %v64 = vld [vmem:[%s0 + $0x70] sm:$0xff]
    %v65 = vld [vmem:[%s0 + $0x78] sm:$0xff]
    %v66 = vld [vmem:[%s0 + $0x80] sm:$0xff]
    %v67 = vld [vmem:[%s0 + $0x88] sm:$0xff]
    %v68 = vld [vmem:[%s0 + $0x90] sm:$0xff]
    %v69 = vld [vmem:[%s0 + $0x98] sm:$0xff]
    %v70 = vld [vmem:[%s0 + $0xa0] sm:$0xff]
    %v71 = vld [vmem:[%s0 + $0xa8] sm:$0xff]
    %v72 = vld [vmem:[%s0 + $0xb0] sm:$0xff]
    %v73 = vld [vmem:[%s0 + $0xb8] sm:$0xff]
    %v74 = vld [vmem:[%s1] sm:$0x1]
    %v75 = vld [vmem:[%s1 + $0x1] sm:$0x1]
    %v76 = vld [vmem:[%s1 + $0x2] sm:$0x1]
    %v77 = vld [vmem:[%s1 + $0x3] sm:$0x1]
    %v78 = vld [vmem:[%s1 + $0x4] sm:$0x1]
    %v79 = vld [vmem:[%s1 + $0x5] sm:$0x1]
    %v80 = vld [vmem:[%s1 + $0x6] sm:$0x1]
    %v81 = vld [vmem:[%s1 + $0x7] sm:$0x1]
    %v82 = vld [vmem:[%s1 + $0x8] sm:$0x1]
    %v83 = vld [vmem:[%s1 + $0x9] sm:$0x1]
    %v84 = vld [vmem:[%s1 + $0xa] sm:$0x1]
    %v85 = vld [vmem:[%s1 + $0xb] sm:$0x1]
    %v86 = vld [vmem:[%s2] sm:$0x1]
    %v87 = vld [vmem:[%s2 + $0x1] sm:$0x1]
    %v88 = vld [vmem:[%s2 + $0x2] sm:$0x1]
    %v89 = vld [vmem:[#allocation2] sm:$0xff]
    %v90 = vld [vmem:[#allocation2 + $0x8] sm:$0xff]
    %v91 = vld [vmem:[#allocation2 + $0x10] sm:$0xff]
    %v92 = vld [vmem:[%s4] sm:$0x1]
    %v93 = vld [vmem:[%s4 + $0x1] sm:$0x1]
    %v94 = vld [vmem:[%s4 + $0x2] sm:$0x1]
    %v95 = vld [vmem:[%s5] sm:$0x1]
    %v96 = vld [vmem:[%s5 + $0x1] sm:$0x1]
    %v97 = vld [vmem:[%s5 + $0x2] sm:$0x1]
    %v98 = vld [vmem:[%s6] sm:$0x1]
    %v99 = vld [vmem:[%s6 + $0x1] sm:$0x1]
    %v100 = vld [vmem:[%s6 + $0x2] sm:$0x1]
    %v101 = vld [vmem:[%s7] sm:$0x3]
    %v102 = vld [vmem:[%s7 + $0x2] sm:$0x3]
    %v103 = vld [vmem:[%s7 + $0x4] sm:$0x3]
    %v104 = vld [vmem:[%s8] sm:$0xff]
    %v105 = vld [vmem:[%s8 + $0x8] sm:$0xff]
    %v106 = vld [vmem:[%s8 + $0x10] sm:$0xff]
    %v107 = vld [vmem:[%s8 + $0x18] sm:$0xff]
    %v108 = vld [vmem:[%s8 + $0x20] sm:$0xff]
    %v109 = vld [vmem:[%s8 + $0x28] sm:$0xff]
    %v110 = vld [vmem:[%s8 + $0x30] sm:$0xff]
    %v111 = vld [vmem:[%s8 + $0x38] sm:$0xff]
    %v112 = vld [vmem:[%s8 + $0x40] sm:$0xff]
    %v113 = vld [vmem:[%s8 + $0x48] sm:$0xff]
    %v114 = vld [vmem:[%s8 + $0x50] sm:$0xff]
    %v115 = vld [vmem:[%s8 + $0x58] sm:$0xff]
    %v116 = vld [vmem:[%s9] sm:$0x1]
    %v117 = vld [vmem:[%s9 + $0x1] sm:$0x1]
    %v118 = vld [vmem:[%s9 + $0x2] sm:$0x1]
    %v123 = vlaneseq
    %v124 = vshrl.u32 %v123, 7
    %v125 = vsub.s32 0, %v124
    %v126 = vrot.slane %v74, %v125
    %v127 = vlaneseq
    %v128 = vshrl.u32 %v127, 7
    %v129 = vsub.s32 0, %v128
    %v130 = vrot.slane %v75, %v129
    %v131 = vlaneseq
    %v132 = vshrl.u32 %v131, 7
    %v133 = vsub.s32 0, %v132
    %v134 = vrot.slane %v76, %v133
    %v135 = vlaneseq
    %v136 = vshrl.u32 %v135, 7
    %v137 = vsub.s32 0, %v136
    %v138 = vrot.slane %v77, %v137
    %v143 = vmul.f32 %v50, %v126
    %v144 = vmul.f32 %v51, %v130
    %v145 = vmul.f32 %v52, %v134
    %v146 = vmul.f32 %v53, %v138
    %v147 = vmul.f32 %v62, %v126
    %v148 = vmul.f32 %v63, %v130
    %v149 = vmul.f32 %v64, %v134
    %v150 = vmul.f32 %v65, %v138
    %vm151 = vcmask 130048
    %v152 = vsel %vm151, %v143, 0.0
    %v153 = vsel %vm151, %v144, 0.0
    %v154 = vadd.f32 %v152, %v153
    %v155 = vsel %vm151, %v145, 0.0
    %v156 = vadd.f32 %v154, %v155
    %v157 = vsel %vm151, %v146, 0.0
    %v158 = vadd.f32 %v156, %v157
    %v159 = vsel %vm151, %v147, 0.0
    %v160 = vsel %vm151, %v148, 0.0
    %v161 = vadd.f32 %v159, %v160
    %v162 = vsel %vm151, %v149, 0.0
    %v163 = vadd.f32 %v161, %v162
    %v164 = vsel %vm151, %v150, 0.0
    %v165 = vadd.f32 %v163, %v164
    %v166 = vsel %vm151, %v158, 0.0
    %167 = vadd.xlane.f32.xlu0 %v166
    %v168 = vpop.xlane.xlu0 %167
    %v169 = vsel %vm151, %v165, 0.0
    %170 = vadd.xlane.f32.xlu0 %v169
    %v171 = vpop.xlane.xlu0 %170
    %v173 = vlaneseq
    %v174 = vshrl.u32 %v173, 7
    %v175 = vsub.s32 0, %v174
    %v176 = vrot.slane %v86, %v175
    %177 = vset.pattern.permute.xlu0 0
    %178 = vperm.xlu0 %177, %v176
    %v179 = vpop.permute.xlu0 %178
    %v181 = vadd.f32 %v168, %v179
    %v182 = vadd.f32 %v171, %v179
    %v184 = vlaneseq
    %v185 = vshrl.u32 %v184, 7
    %v186 = vsub.s32 0, %v185
    %v187 = vrot.slane %v92, %v186
    %v191 = vlaneseq
    %v192 = vand.u32 %v191, 127
    %v193 = vlaneseq
    %v194 = vshrl.u32 %v193, 7
    %v195 = vsub.s32 %v192, %v194
    %v196 = vrot.slane %v181, %v195
    %v197 = vlaneseq
    %v198 = vshrl.u32 %v197, 7
    %v199 = vsub.s32 %v192, %v198
    %v200 = vrot.slane %v182, %v199
    %vm201 = vcmask 1041409
    %v202 = vsel %vm201, %v200, %v196
    %vm203 = vcmask 64512
    %v204 = vsel %vm203, %v202, 0
    %206 = vmatprep.subr.mxu0 0.0
    %207 = vmatpush1.msra.mxu0 0.0
    %208 = vmatprep.subr.mxu0 0.0
    %209 = vmatpush1.msra.mxu0 0.0
    %210 = vmatprep.subr.mxu0 0.0
    %211 = vmatpush1.msra.mxu0 0.0
    %212 = vmatprep.subr.mxu0 0.0
    %213 = vmatpush1.msra.mxu0 0.0
    %214 = vmatprep.subr.mxu0 0.0
    %215 = vmatpush1.msra.mxu0 0.0
    %216 = vmatprep.subr.mxu0 0.0
    %217 = vmatpush1.msra.mxu0 0.0
    %218 = vmatprep.subr.mxu0 0.0
    %219 = vmatpush1.msra.mxu0 0.0
    %220 = vmatprep.subr.mxu0 0.0
    %221 = vmatpush1.msra.mxu0 0.0
    %222 = vmatprep.subr.mxu0 0.0
    %223 = vmatpush1.msra.mxu0 0.0
    %224 = vmatprep.subr.mxu0 0.0
    %225 = vmatpush1.msra.mxu0 0.0
    %226 = vmatprep.subr.mxu0 0.0
    %227 = vmatpush1.msra.mxu0 0.0
    %228 = vmatprep.subr.mxu0 0.0
    %229 = vmatpush1.msra.mxu0 0.0
    %230 = vmatprep.subr.mxu0 0.0
    %231 = vmatpush1.msra.mxu0 0.0
    %232 = vmatprep.subr.mxu0 0.0
    %233 = vmatpush1.msra.mxu0 0.0
    %234 = vmatprep.subr.mxu0 0.0
    %235 = vmatpush1.msra.mxu0 0.0
    %236 = vmatprep.subr.mxu0 0.0
    %237 = vmatpush1.msra.mxu0 %v89
    %238 = vmatprep.subr.mxu0 0.0
    %239 = vmatpush2.msra.mxu0 0.0
    %240 = vmatprep.subr.mxu0 0.0
    %241 = vmatpush2.msra.mxu0 0.0
    %242 = vmatprep.subr.mxu0 0.0
    %243 = vmatpush2.msra.mxu0 0.0
    %244 = vmatprep.subr.mxu0 0.0
    %245 = vmatpush2.msra.mxu0 0.0
    %246 = vmatprep.subr.mxu0 0.0
    %247 = vmatpush2.msra.mxu0 0.0
    %248 = vmatprep.subr.mxu0 0.0
    %249 = vmatpush2.msra.mxu0 0.0
    %250 = vmatprep.subr.mxu0 0.0
    %251 = vmatpush2.msra.mxu0 0.0
    %252 = vmatprep.subr.mxu0 0.0
    %253 = vmatpush2.msra.mxu0 0.0
    %254 = vmatprep.subr.mxu0 0.0
    %255 = vmatpush2.msra.mxu0 0.0
    %256 = vmatprep.subr.mxu0 0.0
    %257 = vmatpush2.msra.mxu0 0.0
    %258 = vmatprep.subr.mxu0 0.0
    %259 = vmatpush2.msra.mxu0 0.0
    %260 = vmatprep.subr.mxu0 0.0
    %261 = vmatpush2.msra.mxu0 0.0
    %262 = vmatprep.subr.mxu0 0.0
    %263 = vmatpush2.msra.mxu0 0.0
    %264 = vmatprep.subr.mxu0 0.0
    %265 = vmatpush2.msra.mxu0 0.0
    %266 = vmatprep.subr.mxu0 0.0
    %267 = vmatpush2.msra.mxu0 0.0
    %268 = vmatprep.subr.mxu0 0.0
    %269 = vmatpush2.msra.mxu0 0.0
    %270 = vmatprep.mubr.f32.mxu0 0.0
    %271 = vmatmul.mubr.f32.gmra.mxu0 %v204
    %v272 = vpop.f32.mrf.mxu0
    %v273 = vadd.f32 %v187, %v272
    %v274 = vpop.f32.mrf.mxu0
    %275 = vdwg.mxu0
    %vm276 = vcmask 254976
    %v277 = vsel %vm276, %v273, 0.0
    %v278 = vrot.slane %v277, 4
    %v279 = vadd.f32 %v277, %v278
    %v280 = vrot.slane %v279, 2
    %v281 = vadd.f32 %v279, %v280
    %v282 = vrot.slane %v281, 1
    %v283 = vadd.f32 %v281, %v282
    %v284 = vrcp.pop 2.0
    %v285 = vmul.f32 %v283, %v284
    %v286 = vsub.f32 %v273, %v285
    %v287 = vmul.f32 %v286, %v286
    %v288 = vsel %vm276, %v287, 0.0
    %v289 = vrot.slane %v288, 4
    %v290 = vadd.f32 %v288, %v289
    %v291 = vrot.slane %v290, 2
    %v292 = vadd.f32 %v290, %v291
    %v293 = vrot.slane %v292, 1
    %v294 = vadd.f32 %v292, %v293
    %v295 = vmul.f32 %v294, %v284
    %v296 = vadd.f32 %v295, 1e-05
    %v297 = vrsqrt.pop %v296
    %v298 = vmul.f32 %v286, %v297
    %v300 = vlaneseq
    %v301 = vshrl.u32 %v300, 7
    %v302 = vsub.s32 0, %v301
    %v303 = vrot.slane %v95, %v302
    %v305 = vmul.f32 %v298, %v303
    %v307 = vlaneseq
    %v308 = vshrl.u32 %v307, 7
    %v309 = vsub.s32 0, %v308
    %v310 = vrot.slane %v98, %v309
    %v312 = vadd.f32 %v305, %v310
    %v313 = vmax.f32 %v312, 0.0
    %v314 = vmul.f32 %v313, %v101
    %v316 = vlaneseq
    %v317 = vshrl.u32 %v316, 7
    %v318 = vsub.s32 0, %v317
    %v319 = vrot.slane %v116, %v318
    %vm321 = vcmask 261120
    %v323 = vsel %vm321, %v314, 0
    %325 = vmatprep.subr.mxu0 0.0
    %326 = vmatpush1.msra.mxu0 0.0
    %327 = vmatprep.subr.mxu0 0.0
    %328 = vmatpush1.msra.mxu0 0.0
    %329 = vmatprep.subr.mxu0 0.0
    %330 = vmatpush1.msra.mxu0 0.0
    %331 = vmatprep.subr.mxu0 0.0
    %332 = vmatpush1.msra.mxu0 0.0
    %333 = vmatprep.subr.mxu0 0.0
    %334 = vmatpush1.msra.mxu0 0.0
    %335 = vmatprep.subr.mxu0 0.0
    %336 = vmatpush1.msra.mxu0 0.0
    %337 = vmatprep.subr.mxu0 0.0
    %338 = vmatpush1.msra.mxu0 0.0
    %339 = vmatprep.subr.mxu0 0.0
    %340 = vmatpush1.msra.mxu0 0.0
    %341 = vmatprep.subr.mxu0 0.0
    %342 = vmatpush1.msra.mxu0 0.0
    %343 = vmatprep.subr.mxu0 0.0
    %344 = vmatpush1.msra.mxu0 0.0
    %345 = vmatprep.subr.mxu0 0.0
    %346 = vmatpush1.msra.mxu0 0.0
    %347 = vmatprep.subr.mxu0 0.0
    %348 = vmatpush1.msra.mxu0 0.0
    %349 = vmatprep.subr.mxu0 0.0
    %350 = vmatpush1.msra.mxu0 %v107
    %351 = vmatprep.subr.mxu0 0.0
    %352 = vmatpush1.msra.mxu0 %v106
    %353 = vmatprep.subr.mxu0 0.0
    %354 = vmatpush1.msra.mxu0 %v105
    %355 = vmatprep.subr.mxu0 0.0
    %356 = vmatpush1.msra.mxu0 %v104
    %357 = vmatprep.subr.mxu0 0.0
    %358 = vmatpush2.msra.mxu0 0.0
    %359 = vmatprep.subr.mxu0 0.0
    %360 = vmatpush2.msra.mxu0 0.0
    %361 = vmatprep.subr.mxu0 0.0
    %362 = vmatpush2.msra.mxu0 0.0
    %363 = vmatprep.subr.mxu0 0.0
    %364 = vmatpush2.msra.mxu0 0.0
    %365 = vmatprep.subr.mxu0 0.0
    %366 = vmatpush2.msra.mxu0 0.0
    %367 = vmatprep.subr.mxu0 0.0
    %368 = vmatpush2.msra.mxu0 0.0
    %369 = vmatprep.subr.mxu0 0.0
    %370 = vmatpush2.msra.mxu0 0.0
    %371 = vmatprep.subr.mxu0 0.0
    %372 = vmatpush2.msra.mxu0 0.0
    %373 = vmatprep.subr.mxu0 0.0
    %374 = vmatpush2.msra.mxu0 0.0
    %375 = vmatprep.subr.mxu0 0.0
    %376 = vmatpush2.msra.mxu0 0.0
    %377 = vmatprep.subr.mxu0 0.0
    %378 = vmatpush2.msra.mxu0 0.0
    %379 = vmatprep.subr.mxu0 0.0
    %380 = vmatpush2.msra.mxu0 0.0
    %381 = vmatprep.subr.mxu0 0.0
    %382 = vmatpush2.msra.mxu0 0.0
    %383 = vmatprep.subr.mxu0 0.0
    %384 = vmatpush2.msra.mxu0 0.0
    %385 = vmatprep.subr.mxu0 0.0
    %386 = vmatpush2.msra.mxu0 0.0
    %387 = vmatprep.subr.mxu0 0.0
    %388 = vmatpush2.msra.mxu0 0.0
    %389 = vmatprep.mubr.f32.mxu0 0.0
    %390 = vmatmul.mubr.f32.gmra.mxu0 %v323
    %v391 = vpop.f32.mrf.mxu0
    %v392 = vadd.f32 %v319, %v391
    %v393 = vpop.f32.mrf.mxu0
    %394 = vdwg.mxu0
    %vm395 = vcmask 58368
    %396 = vst.msk [vmem:[#allocation5] sm:$0x3] %vm395, %v392
    %v401 = vlaneseq
    %v402 = vshrl.u32 %v401, 7
    %v403 = vsub.s32 0, %v402
    %v404 = vrot.slane %v78, %v403
    %v405 = vlaneseq
    %v406 = vshrl.u32 %v405, 7
    %v407 = vsub.s32 0, %v406
    %v408 = vrot.slane %v79, %v407
    %v409 = vlaneseq
    %v410 = vshrl.u32 %v409, 7
    %v411 = vsub.s32 0, %v410
    %v412 = vrot.slane %v80, %v411
    %v413 = vlaneseq
    %v414 = vshrl.u32 %v413, 7
    %v415 = vsub.s32 0, %v414
    %v416 = vrot.slane %v81, %v415
    %v421 = vmul.f32 %v54, %v404
    %v422 = vmul.f32 %v55, %v408
    %v423 = vmul.f32 %v56, %v412
    %v424 = vmul.f32 %v57, %v416
    %v425 = vmul.f32 %v66, %v404
    %v426 = vmul.f32 %v67, %v408
    %v427 = vmul.f32 %v68, %v412
    %v428 = vmul.f32 %v69, %v416
    %v429 = vsel %vm151, %v421, 0.0
    %v430 = vsel %vm151, %v422, 0.0
    %v431 = vadd.f32 %v429, %v430
    %v432 = vsel %vm151, %v423, 0.0
    %v433 = vadd.f32 %v431, %v432
    %v434 = vsel %vm151, %v424, 0.0
    %v435 = vadd.f32 %v433, %v434
    %v436 = vsel %vm151, %v425, 0.0
    %v437 = vsel %vm151, %v426, 0.0
    %v438 = vadd.f32 %v436, %v437
    %v439 = vsel %vm151, %v427, 0.0
    %v440 = vadd.f32 %v438, %v439
    %v441 = vsel %vm151, %v428, 0.0
    %v442 = vadd.f32 %v440, %v441
    %v443 = vsel %vm151, %v435, 0.0
    %444 = vadd.xlane.f32.xlu0 %v443
    %v445 = vpop.xlane.xlu0 %444
    %v446 = vsel %vm151, %v442, 0.0
    %447 = vadd.xlane.f32.xlu0 %v446
    %v448 = vpop.xlane.xlu0 %447
    %v450 = vlaneseq
    %v451 = vshrl.u32 %v450, 7
    %v452 = vsub.s32 0, %v451
    %v453 = vrot.slane %v87, %v452
    %454 = vset.pattern.permute.xlu0 0
    %455 = vperm.xlu0 %454, %v453
    %v456 = vpop.permute.xlu0 %455
    %v458 = vadd.f32 %v445, %v456
    %v459 = vadd.f32 %v448, %v456
    %v461 = vlaneseq
    %v462 = vshrl.u32 %v461, 7
    %v463 = vsub.s32 0, %v462
    %v464 = vrot.slane %v93, %v463
    %v468 = vlaneseq
    %v469 = vshrl.u32 %v468, 7
    %v470 = vsub.s32 %v192, %v469
    %v471 = vrot.slane %v458, %v470
    %v472 = vlaneseq
    %v473 = vshrl.u32 %v472, 7
    %v474 = vsub.s32 %v192, %v473
    %v475 = vrot.slane %v459, %v474
    %v476 = vsel %vm201, %v475, %v471
    %v477 = vsel %vm203, %v476, 0
    %479 = vmatprep.subr.mxu0 0.0
    %480 = vmatpush1.msra.mxu0 0.0
    %481 = vmatprep.subr.mxu0 0.0
    %482 = vmatpush1.msra.mxu0 0.0
    %483 = vmatprep.subr.mxu0 0.0
    %484 = vmatpush1.msra.mxu0 0.0
    %485 = vmatprep.subr.mxu0 0.0
    %486 = vmatpush1.msra.mxu0 0.0
    %487 = vmatprep.subr.mxu0 0.0
    %488 = vmatpush1.msra.mxu0 0.0
    %489 = vmatprep.subr.mxu0 0.0
    %490 = vmatpush1.msra.mxu0 0.0
    %491 = vmatprep.subr.mxu0 0.0
    %492 = vmatpush1.msra.mxu0 0.0
    %493 = vmatprep.subr.mxu0 0.0
    %494 = vmatpush1.msra.mxu0 0.0
    %495 = vmatprep.subr.mxu0 0.0
    %496 = vmatpush1.msra.mxu0 0.0
    %497 = vmatprep.subr.mxu0 0.0
    %498 = vmatpush1.msra.mxu0 0.0
    %499 = vmatprep.subr.mxu0 0.0
    %500 = vmatpush1.msra.mxu0 0.0
    %501 = vmatprep.subr.mxu0 0.0
    %502 = vmatpush1.msra.mxu0 0.0
    %503 = vmatprep.subr.mxu0 0.0
    %504 = vmatpush1.msra.mxu0 0.0
    %505 = vmatprep.subr.mxu0 0.0
    %506 = vmatpush1.msra.mxu0 0.0
    %507 = vmatprep.subr.mxu0 0.0
    %508 = vmatpush1.msra.mxu0 0.0
    %509 = vmatprep.subr.mxu0 0.0
    %510 = vmatpush1.msra.mxu0 %v90
    %511 = vmatprep.subr.mxu0 0.0
    %512 = vmatpush2.msra.mxu0 0.0
    %513 = vmatprep.subr.mxu0 0.0
    %514 = vmatpush2.msra.mxu0 0.0
    %515 = vmatprep.subr.mxu0 0.0
    %516 = vmatpush2.msra.mxu0 0.0
    %517 = vmatprep.subr.mxu0 0.0
    %518 = vmatpush2.msra.mxu0 0.0
    %519 = vmatprep.subr.mxu0 0.0
    %520 = vmatpush2.msra.mxu0 0.0
    %521 = vmatprep.subr.mxu0 0.0
    %522 = vmatpush2.msra.mxu0 0.0
    %523 = vmatprep.subr.mxu0 0.0
    %524 = vmatpush2.msra.mxu0 0.0
    %525 = vmatprep.subr.mxu0 0.0
    %526 = vmatpush2.msra.mxu0 0.0
    %527 = vmatprep.subr.mxu0 0.0
    %528 = vmatpush2.msra.mxu0 0.0
    %529 = vmatprep.subr.mxu0 0.0
    %530 = vmatpush2.msra.mxu0 0.0
    %531 = vmatprep.subr.mxu0 0.0
    %532 = vmatpush2.msra.mxu0 0.0
    %533 = vmatprep.subr.mxu0 0.0
    %534 = vmatpush2.msra.mxu0 0.0
    %535 = vmatprep.subr.mxu0 0.0
    %536 = vmatpush2.msra.mxu0 0.0
    %537 = vmatprep.subr.mxu0 0.0
    %538 = vmatpush2.msra.mxu0 0.0
    %539 = vmatprep.subr.mxu0 0.0
    %540 = vmatpush2.msra.mxu0 0.0
    %541 = vmatprep.subr.mxu0 0.0
    %542 = vmatpush2.msra.mxu0 0.0
    %543 = vmatprep.mubr.f32.mxu0 0.0
    %544 = vmatmul.mubr.f32.gmra.mxu0 %v477
    %v545 = vpop.f32.mrf.mxu0
    %v546 = vadd.f32 %v464, %v545
    %v547 = vpop.f32.mrf.mxu0
    %548 = vdwg.mxu0
    %v549 = vsel %vm276, %v546, 0.0
    %v550 = vrot.slane %v549, 4
    %v551 = vadd.f32 %v549, %v550
    %v552 = vrot.slane %v551, 2
    %v553 = vadd.f32 %v551, %v552
    %v554 = vrot.slane %v553, 1
    %v555 = vadd.f32 %v553, %v554
    %v556 = vmul.f32 %v555, %v284
    %v557 = vsub.f32 %v546, %v556
    %v558 = vmul.f32 %v557, %v557
    %v559 = vsel %vm276, %v558, 0.0
    %v560 = vrot.slane %v559, 4
    %v561 = vadd.f32 %v559, %v560
    %v562 = vrot.slane %v561, 2
    %v563 = vadd.f32 %v561, %v562
    %v564 = vrot.slane %v563, 1
    %v565 = vadd.f32 %v563, %v564
    %v566 = vmul.f32 %v565, %v284
    %v567 = vadd.f32 %v566, 1e-05
    %v568 = vrsqrt.pop %v567
    %v569 = vmul.f32 %v557, %v568
    %v571 = vlaneseq
    %v572 = vshrl.u32 %v571, 7
    %v573 = vsub.s32 0, %v572
    %v574 = vrot.slane %v96, %v573
    %v576 = vmul.f32 %v569, %v574
    %v578 = vlaneseq
    %v579 = vshrl.u32 %v578, 7
    %v580 = vsub.s32 0, %v579
    %v581 = vrot.slane %v99, %v580
    %v583 = vadd.f32 %v576, %v581
    %v584 = vmax.f32 %v583, 0.0
    %v585 = vmul.f32 %v584, %v102
    %v587 = vlaneseq
    %v588 = vshrl.u32 %v587, 7
    %v589 = vsub.s32 0, %v588
    %v590 = vrot.slane %v117, %v589
    %v593 = vsel %vm321, %v585, 0
    %595 = vmatprep.subr.mxu0 0.0
    %596 = vmatpush1.msra.mxu0 0.0
    %597 = vmatprep.subr.mxu0 0.0
    %598 = vmatpush1.msra.mxu0 0.0
    %599 = vmatprep.subr.mxu0 0.0
    %600 = vmatpush1.msra.mxu0 0.0
    %601 = vmatprep.subr.mxu0 0.0
    %602 = vmatpush1.msra.mxu0 0.0
    %603 = vmatprep.subr.mxu0 0.0
    %604 = vmatpush1.msra.mxu0 0.0
    %605 = vmatprep.subr.mxu0 0.0
    %606 = vmatpush1.msra.mxu0 0.0
    %607 = vmatprep.subr.mxu0 0.0
    %608 = vmatpush1.msra.mxu0 0.0
    %609 = vmatprep.subr.mxu0 0.0
    %610 = vmatpush1.msra.mxu0 0.0
    %611 = vmatprep.subr.mxu0 0.0
    %612 = vmatpush1.msra.mxu0 0.0
    %613 = vmatprep.subr.mxu0 0.0
    %614 = vmatpush1.msra.mxu0 0.0
    %615 = vmatprep.subr.mxu0 0.0
    %616 = vmatpush1.msra.mxu0 0.0
    %617 = vmatprep.subr.mxu0 0.0
    %618 = vmatpush1.msra.mxu0 0.0
    %619 = vmatprep.subr.mxu0 0.0
    %620 = vmatpush1.msra.mxu0 %v111
    %621 = vmatprep.subr.mxu0 0.0
    %622 = vmatpush1.msra.mxu0 %v110
    %623 = vmatprep.subr.mxu0 0.0
    %624 = vmatpush1.msra.mxu0 %v109
    %625 = vmatprep.subr.mxu0 0.0
    %626 = vmatpush1.msra.mxu0 %v108
    %627 = vmatprep.subr.mxu0 0.0
    %628 = vmatpush2.msra.mxu0 0.0
    %629 = vmatprep.subr.mxu0 0.0
    %630 = vmatpush2.msra.mxu0 0.0
    %631 = vmatprep.subr.mxu0 0.0
    %632 = vmatpush2.msra.mxu0 0.0
    %633 = vmatprep.subr.mxu0 0.0
    %634 = vmatpush2.msra.mxu0 0.0
    %635 = vmatprep.subr.mxu0 0.0
    %636 = vmatpush2.msra.mxu0 0.0
    %637 = vmatprep.subr.mxu0 0.0
    %638 = vmatpush2.msra.mxu0 0.0
    %639 = vmatprep.subr.mxu0 0.0
    %640 = vmatpush2.msra.mxu0 0.0
    %641 = vmatprep.subr.mxu0 0.0
    %642 = vmatpush2.msra.mxu0 0.0
    %643 = vmatprep.subr.mxu0 0.0
    %644 = vmatpush2.msra.mxu0 0.0
    %645 = vmatprep.subr.mxu0 0.0
    %646 = vmatpush2.msra.mxu0 0.0
    %647 = vmatprep.subr.mxu0 0.0
    %648 = vmatpush2.msra.mxu0 0.0
    %649 = vmatprep.subr.mxu0 0.0
    %650 = vmatpush2.msra.mxu0 0.0
    %651 = vmatprep.subr.mxu0 0.0
    %652 = vmatpush2.msra.mxu0 0.0
    %653 = vmatprep.subr.mxu0 0.0
    %654 = vmatpush2.msra.mxu0 0.0
    %655 = vmatprep.subr.mxu0 0.0
    %656 = vmatpush2.msra.mxu0 0.0
    %657 = vmatprep.subr.mxu0 0.0
    %658 = vmatpush2.msra.mxu0 0.0
    %659 = vmatprep.mubr.f32.mxu0 0.0
    %660 = vmatmul.mubr.f32.gmra.mxu0 %v593
    %v661 = vpop.f32.mrf.mxu0
    %v662 = vadd.f32 %v590, %v661
    %v663 = vpop.f32.mrf.mxu0
    %664 = vdwg.mxu0
    %s665 = scalar_lea.vmem [#allocation5], 2
    %666 = vst.msk [vmem:[%s665] sm:$0x3] %vm395, %v662
    %v671 = vlaneseq
    %v672 = vshrl.u32 %v671, 7
    %v673 = vsub.s32 0, %v672
    %v674 = vrot.slane %v82, %v673
    %v675 = vlaneseq
    %v676 = vshrl.u32 %v675, 7
    %v677 = vsub.s32 0, %v676
    %v678 = vrot.slane %v83, %v677
    %v679 = vlaneseq
    %v680 = vshrl.u32 %v679, 7
    %v681 = vsub.s32 0, %v680
    %v682 = vrot.slane %v84, %v681
    %v683 = vlaneseq
    %v684 = vshrl.u32 %v683, 7
    %v685 = vsub.s32 0, %v684
    %v686 = vrot.slane %v85, %v685
    %v691 = vmul.f32 %v58, %v674
    %v692 = vmul.f32 %v59, %v678
    %v693 = vmul.f32 %v60, %v682
    %v694 = vmul.f32 %v61, %v686
    %v695 = vmul.f32 %v70, %v674
    %v696 = vmul.f32 %v71, %v678
    %v697 = vmul.f32 %v72, %v682
    %v698 = vmul.f32 %v73, %v686
    %v699 = vsel %vm151, %v691, 0.0
    %v700 = vsel %vm151, %v692, 0.0
    %v701 = vadd.f32 %v699, %v700
    %v702 = vsel %vm151, %v693, 0.0
    %v703 = vadd.f32 %v701, %v702
    %v704 = vsel %vm151, %v694, 0.0
    %v705 = vadd.f32 %v703, %v704
    %v706 = vsel %vm151, %v695, 0.0
    %v707 = vsel %vm151, %v696, 0.0
    %v708 = vadd.f32 %v706, %v707
    %v709 = vsel %vm151, %v697, 0.0
    %v710 = vadd.f32 %v708, %v709
    %v711 = vsel %vm151, %v698, 0.0
    %v712 = vadd.f32 %v710, %v711
    %v713 = vsel %vm151, %v705, 0.0
    %714 = vadd.xlane.f32.xlu0 %v713
    %v715 = vpop.xlane.xlu0 %714
    %v716 = vsel %vm151, %v712, 0.0
    %717 = vadd.xlane.f32.xlu0 %v716
    %v718 = vpop.xlane.xlu0 %717
    %v720 = vlaneseq
    %v721 = vshrl.u32 %v720, 7
    %v722 = vsub.s32 0, %v721
    %v723 = vrot.slane %v88, %v722
    %724 = vset.pattern.permute.xlu0 0
    %725 = vperm.xlu0 %724, %v723
    %v726 = vpop.permute.xlu0 %725
    %v728 = vadd.f32 %v715, %v726
    %v729 = vadd.f32 %v718, %v726
    %v731 = vlaneseq
    %v732 = vshrl.u32 %v731, 7
    %v733 = vsub.s32 0, %v732
    %v734 = vrot.slane %v94, %v733
    %v738 = vlaneseq
    %v739 = vshrl.u32 %v738, 7
    %v740 = vsub.s32 %v192, %v739
    %v741 = vrot.slane %v728, %v740
    %v742 = vlaneseq
    %v743 = vshrl.u32 %v742, 7
    %v744 = vsub.s32 %v192, %v743
    %v745 = vrot.slane %v729, %v744
    %v746 = vsel %vm201, %v745, %v741
    %v747 = vsel %vm203, %v746, 0
    %749 = vmatprep.subr.mxu0 0.0
    %750 = vmatpush1.msra.mxu0 0.0
    %751 = vmatprep.subr.mxu0 0.0
    %752 = vmatpush1.msra.mxu0 0.0
    %753 = vmatprep.subr.mxu0 0.0
    %754 = vmatpush1.msra.mxu0 0.0
    %755 = vmatprep.subr.mxu0 0.0
    %756 = vmatpush1.msra.mxu0 0.0
    %757 = vmatprep.subr.mxu0 0.0
    %758 = vmatpush1.msra.mxu0 0.0
    %759 = vmatprep.subr.mxu0 0.0
    %760 = vmatpush1.msra.mxu0 0.0
    %761 = vmatprep.subr.mxu0 0.0
    %762 = vmatpush1.msra.mxu0 0.0
    %763 = vmatprep.subr.mxu0 0.0
    %764 = vmatpush1.msra.mxu0 0.0
    %765 = vmatprep.subr.mxu0 0.0
    %766 = vmatpush1.msra.mxu0 0.0
    %767 = vmatprep.subr.mxu0 0.0
    %768 = vmatpush1.msra.mxu0 0.0
    %769 = vmatprep.subr.mxu0 0.0
    %770 = vmatpush1.msra.mxu0 0.0
    %771 = vmatprep.subr.mxu0 0.0
    %772 = vmatpush1.msra.mxu0 0.0
    %773 = vmatprep.subr.mxu0 0.0
    %774 = vmatpush1.msra.mxu0 0.0
    %775 = vmatprep.subr.mxu0 0.0
    %776 = vmatpush1.msra.mxu0 0.0
    %777 = vmatprep.subr.mxu0 0.0
    %778 = vmatpush1.msra.mxu0 0.0
    %779 = vmatprep.subr.mxu0 0.0
    %780 = vmatpush1.msra.mxu0 %v91
    %781 = vmatprep.subr.mxu0 0.0
    %782 = vmatpush2.msra.mxu0 0.0
    %783 = vmatprep.subr.mxu0 0.0
    %784 = vmatpush2.msra.mxu0 0.0
    %785 = vmatprep.subr.mxu0 0.0
    %786 = vmatpush2.msra.mxu0 0.0
    %787 = vmatprep.subr.mxu0 0.0
    %788 = vmatpush2.msra.mxu0 0.0
    %789 = vmatprep.subr.mxu0 0.0
    %790 = vmatpush2.msra.mxu0 0.0
    %791 = vmatprep.subr.mxu0 0.0
    %792 = vmatpush2.msra.mxu0 0.0
    %793 = vmatprep.subr.mxu0 0.0
    %794 = vmatpush2.msra.mxu0 0.0
    %795 = vmatprep.subr.mxu0 0.0
    %796 = vmatpush2.msra.mxu0 0.0
    %797 = vmatprep.subr.mxu0 0.0
    %798 = vmatpush2.msra.mxu0 0.0
    %799 = vmatprep.subr.mxu0 0.0
    %800 = vmatpush2.msra.mxu0 0.0
    %801 = vmatprep.subr.mxu0 0.0
    %802 = vmatpush2.msra.mxu0 0.0
    %803 = vmatprep.subr.mxu0 0.0
    %804 = vmatpush2.msra.mxu0 0.0
    %805 = vmatprep.subr.mxu0 0.0
    %806 = vmatpush2.msra.mxu0 0.0
    %807 = vmatprep.subr.mxu0 0.0
    %808 = vmatpush2.msra.mxu0 0.0
    %809 = vmatprep.subr.mxu0 0.0
    %810 = vmatpush2.msra.mxu0 0.0
    %811 = vmatprep.subr.mxu0 0.0
    %812 = vmatpush2.msra.mxu0 0.0
    %813 = vmatprep.mubr.f32.mxu0 0.0
    %814 = vmatmul.mubr.f32.gmra.mxu0 %v747
    %v815 = vpop.f32.mrf.mxu0
    %v816 = vadd.f32 %v734, %v815
    %v817 = vpop.f32.mrf.mxu0
    %818 = vdwg.mxu0
    %v819 = vsel %vm276, %v816, 0.0
    %v820 = vrot.slane %v819, 4
    %v821 = vadd.f32 %v819, %v820
    %v822 = vrot.slane %v821, 2
    %v823 = vadd.f32 %v821, %v822
    %v824 = vrot.slane %v823, 1
    %v825 = vadd.f32 %v823, %v824
    %v826 = vmul.f32 %v825, %v284
    %v827 = vsub.f32 %v816, %v826
    %v828 = vmul.f32 %v827, %v827
    %v829 = vsel %vm276, %v828, 0.0
    %v830 = vrot.slane %v829, 4
    %v831 = vadd.f32 %v829, %v830
    %v832 = vrot.slane %v831, 2
    %v833 = vadd.f32 %v831, %v832
    %v834 = vrot.slane %v833, 1
    %v835 = vadd.f32 %v833, %v834
    %v836 = vmul.f32 %v835, %v284
    %v837 = vadd.f32 %v836, 1e-05
    %v838 = vrsqrt.pop %v837
    %v839 = vmul.f32 %v827, %v838
    %v841 = vlaneseq
    %v842 = vshrl.u32 %v841, 7
    %v843 = vsub.s32 0, %v842
    %v844 = vrot.slane %v97, %v843
    %v846 = vmul.f32 %v839, %v844
    %v848 = vlaneseq
    %v849 = vshrl.u32 %v848, 7
    %v850 = vsub.s32 0, %v849
    %v851 = vrot.slane %v100, %v850
    %v853 = vadd.f32 %v846, %v851
    %v854 = vmax.f32 %v853, 0.0
    %v855 = vmul.f32 %v854, %v103
    %v857 = vlaneseq
    %v858 = vshrl.u32 %v857, 7
    %v859 = vsub.s32 0, %v858
    %v860 = vrot.slane %v118, %v859
    %v863 = vsel %vm321, %v855, 0
    %865 = vmatprep.subr.mxu0 0.0
    %866 = vmatpush1.msra.mxu0 0.0
    %867 = vmatprep.subr.mxu0 0.0
    %868 = vmatpush1.msra.mxu0 0.0
    %869 = vmatprep.subr.mxu0 0.0
    %870 = vmatpush1.msra.mxu0 0.0
    %871 = vmatprep.subr.mxu0 0.0
    %872 = vmatpush1.msra.mxu0 0.0
    %873 = vmatprep.subr.mxu0 0.0
    %874 = vmatpush1.msra.mxu0 0.0
    %875 = vmatprep.subr.mxu0 0.0
    %876 = vmatpush1.msra.mxu0 0.0
    %877 = vmatprep.subr.mxu0 0.0
    %878 = vmatpush1.msra.mxu0 0.0
    %879 = vmatprep.subr.mxu0 0.0
    %880 = vmatpush1.msra.mxu0 0.0
    %881 = vmatprep.subr.mxu0 0.0
    %882 = vmatpush1.msra.mxu0 0.0
    %883 = vmatprep.subr.mxu0 0.0
    %884 = vmatpush1.msra.mxu0 0.0
    %885 = vmatprep.subr.mxu0 0.0
    %886 = vmatpush1.msra.mxu0 0.0
    %887 = vmatprep.subr.mxu0 0.0
    %888 = vmatpush1.msra.mxu0 0.0
    %889 = vmatprep.subr.mxu0 0.0
    %890 = vmatpush1.msra.mxu0 %v115
    %891 = vmatprep.subr.mxu0 0.0
    %892 = vmatpush1.msra.mxu0 %v114
    %893 = vmatprep.subr.mxu0 0.0
    %894 = vmatpush1.msra.mxu0 %v113
    %895 = vmatprep.subr.mxu0 0.0
    %896 = vmatpush1.msra.mxu0 %v112
    %897 = vmatprep.subr.mxu0 0.0
    %898 = vmatpush2.msra.mxu0 0.0
    %899 = vmatprep.subr.mxu0 0.0
    %900 = vmatpush2.msra.mxu0 0.0
    %901 = vmatprep.subr.mxu0 0.0
    %902 = vmatpush2.msra.mxu0 0.0
    %903 = vmatprep.subr.mxu0 0.0
    %904 = vmatpush2.msra.mxu0 0.0
    %905 = vmatprep.subr.mxu0 0.0
    %906 = vmatpush2.msra.mxu0 0.0
    %907 = vmatprep.subr.mxu0 0.0
    %908 = vmatpush2.msra.mxu0 0.0
    %909 = vmatprep.subr.mxu0 0.0
    %910 = vmatpush2.msra.mxu0 0.0
    %911 = vmatprep.subr.mxu0 0.0
    %912 = vmatpush2.msra.mxu0 0.0
    %913 = vmatprep.subr.mxu0 0.0
    %914 = vmatpush2.msra.mxu0 0.0
    %915 = vmatprep.subr.mxu0 0.0
    %916 = vmatpush2.msra.mxu0 0.0
    %917 = vmatprep.subr.mxu0 0.0
    %918 = vmatpush2.msra.mxu0 0.0
    %919 = vmatprep.subr.mxu0 0.0
    %920 = vmatpush2.msra.mxu0 0.0
    %921 = vmatprep.subr.mxu0 0.0
    %922 = vmatpush2.msra.mxu0 0.0
    %923 = vmatprep.subr.mxu0 0.0
    %924 = vmatpush2.msra.mxu0 0.0
    %925 = vmatprep.subr.mxu0 0.0
    %926 = vmatpush2.msra.mxu0 0.0
    %927 = vmatprep.subr.mxu0 0.0
    %928 = vmatpush2.msra.mxu0 0.0
    %929 = vmatprep.mubr.f32.mxu0 0.0
    %930 = vmatmul.mubr.f32.gmra.mxu0 %v863
    %v931 = vpop.f32.mrf.mxu0
    %v932 = vadd.f32 %v860, %v931
    %v933 = vpop.f32.mrf.mxu0
    %934 = vdwg.mxu0
    %s935 = scalar_lea.vmem [#allocation5], 4
    %936 = vst.msk [vmem:[%s935] sm:$0x3] %vm395, %v932
    // Predicated region
    $region46: #{ada_multi_mlp_forward.1} parent=1 // pred_check
      _
    $region47: #{ada_multi_mlp_forward.1} parent=1 // pred_check_branch
      %938 = sbr.rel (0) target = $region49
    $region48: #{ada_multi_mlp_forward.1} parent=1 // pred_region
      %s940 = ssub.s32 96, 96
      %941 = vsyncadd [#allocation4], %s940
      %s942 = sshll.u32 [#allocation5], 4
      %s943 = int_to_ptr.vmem [resolvable:$true] %s942
      %948 = dma.vmem_to_hbm [thread:$0]  %s943, 96, %s10, [#allocation4], 32, 32, 2
    $region49: #{ada_multi_mlp_forward.1} parent=1 // pred_fallthru
      _
    // Predicated region
    $region50: #{ada_multi_mlp_forward.1} parent=1 // pred_check
      _
    $region51: #{ada_multi_mlp_forward.1} parent=1 // pred_check_branch
      %950 = sbr.rel (0) target = $region53
    $region52: #{ada_multi_mlp_forward.1} parent=1 // pred_region
      %951 = dma.done [#allocation4], 96
    $region53: #{ada_multi_mlp_forward.1} parent=1 // pred_fallthru
      _
    %952 = vsyncpa [#allocation3], 1
    %953 = vsyncpa [#allocation4], 1

</llo_original>
